<compile_context>
chip_gen: v5e
topology: v5e:2x2
jax: 0.10.0
libtpu: 0.0.40
codegen_flags: <defaults>
</compile_context>

<pallas_src>
import jax
import jax.numpy as jnp
from jax.experimental import pallas as pl
from jax.experimental.pallas import tpu as pltpu


HIDDEN = 200                         # PyTorch hidden size
_VMEM_BUDGET = 24 * 1024 * 1024      # conservative tiling budget (all gens)
_VMEM_LIMIT = 32 * 1024 * 1024       # scoped-VMEM limit we request


def _round_up(n, m):
    return ((n + m - 1) // m) * m


def critic_kernel(x_ref, w1_ref, b1_ref, w2_ref, b2_ref, o_ref):
    # x_ref:  (TB, Dp)  fc1 input tile (f32)
    # w1_ref: (Dp, Hp)  fc1 weight (transposed vs PyTorch), zero-padded; f32 or bf16
    # b1_ref: (1, Hp)   fc1 bias (zero-padded, f32)
    # w2_ref: (1, Hp)   output weight row (PyTorch layout, zero-padded, f32)
    # b2_ref: (1, 1)    output bias, SMEM scalar
    # o_ref:  (TB, 1)   value
    x = x_ref[...].astype(w1_ref.dtype)          # no-op for f32; VPU cast for bf16 MXU path
    h = jnp.dot(x, w1_ref[...], preferred_element_type=jnp.float32)
    h = jnp.maximum(h + b1_ref[...], 0.0)        # bias + ReLU on the VPU (f32)
    # 200->1 layer: VPU multiply + XLU lane reduce; scalar bias from SMEM.
    v = jnp.sum(h * w2_ref[...], axis=-1, keepdims=True) + b2_ref[0, 0]
    o_ref[...] = v.astype(o_ref.dtype)


def _single_block_rows(Dp, Hp, cap=4096):
    """Max rows that comfortably fit one un-pipelined VMEM block."""
    per_row = Dp * 4 + 2 * Hp * 4 + 4            # x row + h / h*w2 temporaries + out
    weights = (Dp * Hp + 2 * Hp) * 4
    rows = (_VMEM_BUDGET - weights) // per_row
    return max(8, min(cap, (rows // 8) * 8))


def _grid_tile_rows(B, Dp, Hp, target=2048):
    """Batch-tile rows for the pipelined path, bounded by the VMEM budget."""
    per_row = 2 * Dp * 4 + 2 * 4 + 2 * Hp * 4    # dbl-buffered x + out, f32 temporaries
    weights = 2 * (Dp * Hp + 2 * Hp) * 4         # residents (conservatively dbl-buffered)
    cap = max(128, ((_VMEM_BUDGET - weights) // per_row) // 128 * 128)
    tb = min(target, cap)
    # Keep >= 2 tiles so the "parallel" batch axis still feeds both v7x TCs.
    two_tc = max(128, _round_up((B + 1) // 2, 128))
    return min(tb, two_tc)


def critic_forward(x, w1, b1, w2_row, b2, *, batch_tile=None,
                   single_block_rows=None, use_bf16=False):
    """Forward pass of Critic.

    x:      (B, D)  f32
    w1:     (D, H)  fc1 weight (transposed vs PyTorch's (H, D))
    b1:     (1, H)  fc1 bias
    w2_row: (1, H)  output weight (same layout as PyTorch's (1, 200))
    b2:     (1, 1)  output bias
    """
    B, D = x.shape
    H = w1.shape[1]
    assert w1.shape == (D, H) and b1.shape == (1, H)
    assert w2_row.shape == (1, H) and b2.shape == (1, 1)

    Dp = _round_up(D, 128)
    Hp = _round_up(H, 128)

    # Exact zero padding: padded K columns / hidden entries contribute 0.
    w1p = jnp.pad(w1, ((0, Dp - D), (0, Hp - H))) if (Dp != D or Hp != H) else w1
    b1p = jnp.pad(b1, ((0, 0), (0, Hp - H))) if Hp != H else b1
    w2p = jnp.pad(w2_row, ((0, 0), (0, Hp - H))) if Hp != H else w2_row
    xp = jnp.pad(x, ((0, 0), (0, Dp - D))) if Dp != D else x
    if use_bf16:
        w1p = w1p.astype(jnp.bfloat16)           # x is cast in-kernel (HBM read stays f32)

    sb_rows = single_block_rows if single_block_rows is not None else _single_block_rows(Dp, Hp)

    if B <= sb_rows:
        # Latency-bound path: no grid, no pipelining shell, everything in one
        # VMEM block; scalar output bias in SMEM.
        return pl.pallas_call(
            critic_kernel,
            out_shape=jax.ShapeDtypeStruct((B, 1), jnp.float32),
            in_specs=[
                pl.BlockSpec(memory_space=pltpu.MemorySpace.VMEM),  # x
                pl.BlockSpec(memory_space=pltpu.MemorySpace.VMEM),  # w1
                pl.BlockSpec(memory_space=pltpu.MemorySpace.VMEM),  # b1
                pl.BlockSpec(memory_space=pltpu.MemorySpace.VMEM),  # w2 row
                pl.BlockSpec(memory_space=pltpu.MemorySpace.SMEM),  # b2 scalar
            ],
            out_specs=pl.BlockSpec(memory_space=pltpu.MemorySpace.VMEM),
            compiler_params=pltpu.CompilerParams(vmem_limit_bytes=_VMEM_LIMIT),
        )(xp, w1p, b1p, w2p, b2)

    # Large batch (rollout / training): tile over B with VMEM-resident weights
    # (constant index_map) and a "parallel" batch axis.  No batch padding and
    # no output slice: grid = cdiv(B, tb); the ragged last tile computes on
    # stale rows whose writes Pallas drops.
    tb = batch_tile if batch_tile is not None else _grid_tile_rows(B, Dp, Hp)
    tb = max(128, (min(tb, B) // 128) * 128)     # sublane/lane aligned tile rows
    n_tiles = pl.cdiv(B, tb)

    return pl.pallas_call(
        critic_kernel,
        out_shape=jax.ShapeDtypeStruct((B, 1), jnp.float32),
        grid=(n_tiles,),
        in_specs=[
            pl.BlockSpec((tb, Dp), lambda i: (i, 0)),      # x tile
            pl.BlockSpec((Dp, Hp), lambda i: (0, 0)),      # w1 (resident)
            pl.BlockSpec((1, Hp), lambda i: (0, 0)),       # b1 (resident)
            pl.BlockSpec((1, Hp), lambda i: (0, 0)),       # w2 row (resident)
            pl.BlockSpec((1, 1), lambda i: (0, 0),
                         memory_space=pltpu.MemorySpace.SMEM),  # b2 scalar
        ],
        out_specs=pl.BlockSpec((tb, 1), lambda i: (i, 0)),
        compiler_params=pltpu.CompilerParams(
            dimension_semantics=("parallel",),
            vmem_limit_bytes=_VMEM_LIMIT),
    )(xp, w1p, b1p, w2p, b2)


def init_critic_params(key, input_size, hidden=HIDDEN):
    """Deterministic init mimicking PyTorch's default uniform(-1/sqrt(fan_in), ...)."""
    k1, k2, k3, k4 = jax.random.split(key, 4)
    bound1 = 1.0 / jnp.sqrt(jnp.float32(input_size))
    bound2 = 1.0 / jnp.sqrt(jnp.float32(hidden))
    w1 = jax.random.uniform(k1, (input_size, hidden), jnp.float32, -bound1, bound1)
    b1 = jax.random.uniform(k2, (1, hidden), jnp.float32, -bound1, bound1)
    w2 = jax.random.uniform(k3, (1, hidden), jnp.float32, -bound2, bound2)
    b2 = jax.random.uniform(k4, (1, 1), jnp.float32, -bound2, bound2)
    return w1, b1, w2, b2


def critic_reference(x, w1, b1, w2_row, b2):
    """Pure-JAX reference matching the PyTorch module semantics."""
    h = jnp.maximum(x @ w1 + b1, 0.0)
    return h @ w2_row.T + b2


if __name__ == "__main__":
    key = jax.random.PRNGKey(0)
    k_x1, k_x2, k_x3, k_p1, k_p2 = jax.random.split(key, 5)

    # Case 1: play-time path — tiny batch, single VMEM block, no grid.
    D1 = 128
    w1, b1, w2, b2 = init_critic_params(k_p1, D1)
    x1 = jax.random.normal(k_x1, (8, D1), jnp.float32)
    v1 = jax.block_until_ready(critic_forward(x1, w1, b1, w2, b2))
    assert v1.shape == (8, 1)
    assert jnp.allclose(v1, critic_reference(x1, w1, b1, w2, b2),
                        atol=1e-4, rtol=1e-4), "single-block mismatch"

    # Case 2: rollout path — force the batch-tiled grid with a ragged last
    # tile (1000 % 256 != 0): no wrapper-side x pad, no output slice.
    x2 = jax.random.normal(k_x2, (1000, D1), jnp.float32)
    v2 = jax.block_until_ready(
        critic_forward(x2, w1, b1, w2, b2, batch_tile=256, single_block_rows=128))
    assert v2.shape == (1000, 1)
    assert jnp.allclose(v2, critic_reference(x2, w1, b1, w2, b2),
                        atol=1e-4, rtol=1e-4), "tiled-batch mismatch"

    # Case 2b: optional bf16-MXU path (looser parity by design).
    v2b = jax.block_until_ready(
        critic_forward(x2, w1, b1, w2, b2, batch_tile=256,
                       single_block_rows=128, use_bf16=True))
    assert v2b.shape == (1000, 1)
    assert jnp.allclose(v2b, critic_reference(x2, w1, b1, w2, b2),
                        atol=5e-2, rtol=5e-2), "bf16-path mismatch"

    # Case 3: input_size not a multiple of 128 (exercises exact D padding).
    D2 = 200
    w1b, b1b, w2b, b2b = init_critic_params(k_p2, D2)
    x3 = jax.random.normal(k_x3, (16, D2), jnp.float32)
    v3 = jax.block_until_ready(critic_forward(x3, w1b, b1b, w2b, b2b))
    assert v3.shape == (16, 1)
    assert jnp.allclose(v3, critic_reference(x3, w1b, b1b, w2b, b2b),
                        atol=1e-4, rtol=1e-4), "padded-D mismatch"

    print("KERNEL_OK")
</pallas_src>

<mosaic_0001>
module attributes {stable_mosaic.version = 11 : i64} {
  func.func @critic_kernel(%arg0: memref<8x128xf32, #tpu.memory_space<vmem>>, %arg1: memref<128x256xf32, #tpu.memory_space<vmem>>, %arg2: memref<1x256xf32, #tpu.memory_space<vmem>>, %arg3: memref<1x256xf32, #tpu.memory_space<vmem>>, %arg4: memref<1x1xf32, #tpu.memory_space<smem>>, %arg5: memref<8x1xf32, #tpu.memory_space<vmem>>) attributes {dimension_semantics = [], scalar_prefetch = 0 : i64, scratch_operands = 0 : i64, tpu.core_type = #tpu.core_type<tc>} {
    %c0 = arith.constant 0 : index
    %c0_0 = arith.constant 0 : index
    %0 = vector.load %arg0[%c0, %c0_0] : memref<8x128xf32, #tpu.memory_space<vmem>>, vector<8x128xf32>
    %c0_1 = arith.constant 0 : index
    %c0_2 = arith.constant 0 : index
    %1 = vector.load %arg1[%c0_1, %c0_2] : memref<128x256xf32, #tpu.memory_space<vmem>>, vector<128x256xf32>
    %cst = arith.constant dense<0.000000e+00> : vector<8x256xf32>
    %2 = tpu.matmul %0, %1, %cst {dimension_numbers = #tpu.dot_dimension_numbers<[1], [0], [0], [1], [0, 0, 1, 1], [], []>} : vector<8x128xf32>, vector<128x256xf32>, vector<8x256xf32> -> vector<8x256xf32>
    %c0_3 = arith.constant 0 : index
    %c0_4 = arith.constant 0 : index
    %3 = vector.load %arg2[%c0_3, %c0_4] : memref<1x256xf32, #tpu.memory_space<vmem>>, vector<1x256xf32>
    %4 = vector.broadcast %3 : vector<1x256xf32> to vector<8x256xf32>
    %5 = arith.addf %2, %4 : vector<8x256xf32>
    %cst_5 = arith.constant 0.000000e+00 : f32
    %6 = vector.broadcast %cst_5 : f32 to vector<8x256xf32>
    %7 = arith.maximumf %5, %6 : vector<8x256xf32>
    %c0_6 = arith.constant 0 : index
    %c0_7 = arith.constant 0 : index
    %8 = vector.load %arg3[%c0_6, %c0_7] : memref<1x256xf32, #tpu.memory_space<vmem>>, vector<1x256xf32>
    %9 = vector.broadcast %8 : vector<1x256xf32> to vector<8x256xf32>
    %10 = arith.mulf %7, %9 : vector<8x256xf32>
    %cst_8 = arith.constant dense<0.000000e+00> : vector<8xf32>
    %11 = vector.multi_reduction <add>, %10, %cst_8 [1] : vector<8x256xf32> to vector<8xf32>
    %12 = vector.shape_cast %11 : vector<8xf32> to vector<8x1xf32>
    %c0_9 = arith.constant 0 : index
    %c0_10 = arith.constant 0 : index
    %13 = memref.load %arg4[%c0_9, %c0_10] : memref<1x1xf32, #tpu.memory_space<smem>>
    %14 = vector.broadcast %13 : f32 to vector<8x1xf32>
    %15 = arith.addf %12, %14 : vector<8x1xf32>
    %c0_11 = arith.constant 0 : index
    %c0_12 = arith.constant 0 : index
    %16 = vector.load %arg5[%c0_11, %c0_12] : memref<8x1xf32, #tpu.memory_space<vmem>>, vector<8x1xf32>
    tpu.vector_store %arg5[%c0_11, %c0_12], %15 {strides = array<i32>} : memref<8x1xf32, #tpu.memory_space<vmem>>, vector<8x1xf32>,
    return
  }
}

</mosaic_0001>

<llo_original>
// kernel: tpu_custom_call.1
$region0: #{tpu_custom_call.1}
  #allocation0 [shape = 'u32[]', space=smem, size = 0x4, offset = 0x4, fixed_abs, tag = 'smem constant byte address 0x4 - core index']
  #allocation1 [shape = 'u32[72,128]{1,0:T(1,128)}', space=vmem, size = 0x9000, scoped, tag = 'internal scratch']
  #allocation2 [shape = 'f32[1,1]{1,0:T(1,128)S(6)}', space=smem, size = 0x200, scoped, tag = 'scoped memory for tpu_custom_call.1']
  %s0 = inlined_call_operand.hbm [shape: f32[8,128], index: 0, kind: input, shape index: {}]
  %s1 = inlined_call_operand.hbm [shape: f32[128,256], index: 1, kind: input, shape index: {}]
  %s2 = inlined_call_operand.vmem [shape: f32[1,256], index: 2, kind: input, shape index: {}]
  %s3 = inlined_call_operand.vmem [shape: f32[1,256], index: 3, kind: input, shape index: {}]
  %s4 = inlined_call_operand.<no memory space> [shape: f32[1,1], index: 4, kind: input, shape index: {}]
  %s5 = inlined_call_operand.vmem [shape: f32[8,1], index: 5, kind: output, shape index: {}]
  %s6 = sld [smem:[#allocation0]]
  $region38: #{tpu_custom_call.1} parent=0
    _
  %s8 = ssub.s32 1, %s6
  %s9 = scalar_select 0, %s8, %s6
  %10 = sst [smem:[#allocation2]] %s4
  $region1: #{tpu_custom_call.1} parent=0
    #allocation3 [shape = 'u8[4096]{0}', space=vmem, size = 0x1000, scoped, tag = 'input window, operand 0, single buffered']
    #allocation4 [shape = 's32[1]{0}', space=sflag, size = 0x4, scoped, tag = 'scoped memory for tpu_custom_call.1']
    #allocation5 [shape = 'u8[131072]{0}', space=vmem, size = 0x20000, scoped, tag = 'input window, operand 1, single buffered']
    #allocation6 [shape = 's32[1]{0}', space=sflag, size = 0x4, scoped, tag = 'scoped memory for tpu_custom_call.1']
    %11 = vsyncpa [#allocation4], 0
    %12 = vsyncpa [#allocation6], 0
    // Predicated region
    $region2: #{tpu_custom_call.1} parent=1 // pred_check
      _
    $region3: #{tpu_custom_call.1} parent=1 // pred_check_branch
      %14 = sbr.rel (0) target = $region5
    $region4: #{tpu_custom_call.1} parent=1 // pred_region
      %16 = vsyncadd [#allocation4], 0
      %s18 = sshll.u32 %s0, 4
      %s19 = int_to_ptr.hbm [resolvable:$true] %s18
      %s20 = sshll.u32 [#allocation3], 4
      %s21 = int_to_ptr.vmem [resolvable:$true] %s20
      %23 = dma.hbm_to_vmem [thread:$0]  %s19, 128, %s21, [#allocation4]
    $region5: #{tpu_custom_call.1} parent=1 // pred_fallthru
      _
    // Predicated region
    $region6: #{tpu_custom_call.1} parent=1 // pred_check
      _
    $region7: #{tpu_custom_call.1} parent=1 // pred_check_branch
      %25 = sbr.rel (0) target = $region9
    $region8: #{tpu_custom_call.1} parent=1 // pred_region
      %27 = vsyncadd [#allocation6], 0
      %s28 = sshll.u32 %s1, 4
      %s29 = int_to_ptr.hbm [resolvable:$true] %s28
      %s30 = sshll.u32 [#allocation5], 4
      %s31 = int_to_ptr.vmem [resolvable:$true] %s30
      %36 = dma.hbm_to_vmem [thread:$0]  %s29, 4096, %s31, [#allocation6], 256, 256, 16
    $region9: #{tpu_custom_call.1} parent=1 // pred_fallthru
      _
    // Predicated region
    $region10: #{tpu_custom_call.1} parent=1 // pred_check
      _
    $region11: #{tpu_custom_call.1} parent=1 // pred_check_branch
      %38 = sbr.rel (0) target = $region13
    $region12: #{tpu_custom_call.1} parent=1 // pred_region
      _
    $region13: #{tpu_custom_call.1} parent=1 // pred_fallthru
      _
    // Predicated region
    $region14: #{tpu_custom_call.1} parent=1 // pred_check
      _
    $region15: #{tpu_custom_call.1} parent=1 // pred_check_branch
      %40 = sbr.rel (0) target = $region17
    $region16: #{tpu_custom_call.1} parent=1 // pred_region
      _
    $region17: #{tpu_custom_call.1} parent=1 // pred_fallthru
      _
    // Predicated region
    $region18: #{tpu_custom_call.1} parent=1 // pred_check
      _
    $region19: #{tpu_custom_call.1} parent=1 // pred_check_branch
      %42 = sbr.rel (0) target = $region21
    $region20: #{tpu_custom_call.1} parent=1 // pred_region
      _
    $region21: #{tpu_custom_call.1} parent=1 // pred_fallthru
      _
    // Predicated region
    $region22: #{tpu_custom_call.1} parent=1 // pred_check
      _
    $region23: #{tpu_custom_call.1} parent=1 // pred_check_branch
      %44 = sbr.rel (0) target = $region25
    $region24: #{tpu_custom_call.1} parent=1 // pred_region
      %46 = dma.done [#allocation4], 128
    $region25: #{tpu_custom_call.1} parent=1 // pred_fallthru
      _
    // Predicated region
    $region26: #{tpu_custom_call.1} parent=1 // pred_check
      _
    $region27: #{tpu_custom_call.1} parent=1 // pred_check_branch
      %48 = sbr.rel (0) target = $region29
    $region28: #{tpu_custom_call.1} parent=1 // pred_region
      %50 = dma.done [#allocation6], 4096
    $region29: #{tpu_custom_call.1} parent=1 // pred_fallthru
      _
    %v51 = vld [vmem:[#allocation3] sm:$0xff]
    %v52 = vld [vmem:[#allocation5] sm:$0xff]
    %v53 = vld [vmem:[#allocation5 + $0x8] sm:$0xff]
    %v54 = vld [vmem:[#allocation5 + $0x10] sm:$0xff]
    %v55 = vld [vmem:[#allocation5 + $0x18] sm:$0xff]
    %v56 = vld [vmem:[#allocation5 + $0x20] sm:$0xff]
    %v57 = vld [vmem:[#allocation5 + $0x28] sm:$0xff]
    %v58 = vld [vmem:[#allocation5 + $0x30] sm:$0xff]
    %v59 = vld [vmem:[#allocation5 + $0x38] sm:$0xff]
    %v60 = vld [vmem:[#allocation5 + $0x40] sm:$0xff]
    %v61 = vld [vmem:[#allocation5 + $0x48] sm:$0xff]
    %v62 = vld [vmem:[#allocation5 + $0x50] sm:$0xff]
    %v63 = vld [vmem:[#allocation5 + $0x58] sm:$0xff]
    %v64 = vld [vmem:[#allocation5 + $0x60] sm:$0xff]
    %v65 = vld [vmem:[#allocation5 + $0x68] sm:$0xff]
    %v66 = vld [vmem:[#allocation5 + $0x70] sm:$0xff]
    %v67 = vld [vmem:[#allocation5 + $0x78] sm:$0xff]
    %v68 = vld [vmem:[#allocation5 + $0x80] sm:$0xff]
    %v69 = vld [vmem:[#allocation5 + $0x88] sm:$0xff]
    %v70 = vld [vmem:[#allocation5 + $0x90] sm:$0xff]
    %v71 = vld [vmem:[#allocation5 + $0x98] sm:$0xff]
    %v72 = vld [vmem:[#allocation5 + $0xa0] sm:$0xff]
    %v73 = vld [vmem:[#allocation5 + $0xa8] sm:$0xff]
    %v74 = vld [vmem:[#allocation5 + $0xb0] sm:$0xff]
    %v75 = vld [vmem:[#allocation5 + $0xb8] sm:$0xff]
    %v76 = vld [vmem:[#allocation5 + $0xc0] sm:$0xff]
    %v77 = vld [vmem:[#allocation5 + $0xc8] sm:$0xff]
    %v78 = vld [vmem:[#allocation5 + $0xd0] sm:$0xff]
    %v79 = vld [vmem:[#allocation5 + $0xd8] sm:$0xff]
    %v80 = vld [vmem:[#allocation5 + $0xe0] sm:$0xff]
    %v81 = vld [vmem:[#allocation5 + $0xe8] sm:$0xff]
    %v82 = vld [vmem:[#allocation5 + $0xf0] sm:$0xff]
    %v83 = vld [vmem:[#allocation5 + $0xf8] sm:$0xff]
    %v84 = vld [vmem:[%s2] sm:$0x3]
    %v86 = vperm.slane %v84, 0
    %v87 = vperm.slane %v84, 1
    %90 = vmatpush.msra.mxu0 %v82
    %91 = vmatpush.msra.mxu0 %v80
    %92 = vmatpush.msra.mxu0 %v78
    %93 = vmatpush.msra.mxu0 %v76
    %94 = vmatpush.msra.mxu0 %v74
    %95 = vmatpush.msra.mxu0 %v72
    %96 = vmatpush.msra.mxu0 %v70
    %97 = vmatpush.msra.mxu0 %v68
    %98 = vmatpush.msra.mxu0 %v66
    %99 = vmatpush.msra.mxu0 %v64
    %100 = vmatpush.msra.mxu0 %v62
    %101 = vmatpush.msra.mxu0 %v60
    %102 = vmatpush.msra.mxu0 %v58
    %103 = vmatpush.msra.mxu0 %v56
    %104 = vmatpush.msra.mxu0 %v54
    %105 = vmatpush.msra.mxu0 %v52
    %106 = vmatmul.f32.gmra.mxu0 %v51
    %v107 = vpop.f32.mrf.mxu0
    %v108 = vadd.f32 %v86, %v107
    %109 = vdwg.mxu0
    %110 = vmatpush.msra.mxu0 %v83
    %111 = vmatpush.msra.mxu0 %v81
    %112 = vmatpush.msra.mxu0 %v79
    %113 = vmatpush.msra.mxu0 %v77
    %114 = vmatpush.msra.mxu0 %v75
    %115 = vmatpush.msra.mxu0 %v73
    %116 = vmatpush.msra.mxu0 %v71
    %117 = vmatpush.msra.mxu0 %v69
    %118 = vmatpush.msra.mxu0 %v67
    %119 = vmatpush.msra.mxu0 %v65
    %120 = vmatpush.msra.mxu0 %v63
    %121 = vmatpush.msra.mxu0 %v61
    %122 = vmatpush.msra.mxu0 %v59
    %123 = vmatpush.msra.mxu0 %v57
    %124 = vmatpush.msra.mxu0 %v55
    %125 = vmatpush.msra.mxu0 %v53
    %126 = vmatmul.f32.gmra.mxu0 %v51
    %v127 = vpop.f32.mrf.mxu0
    %v128 = vadd.f32 %v87, %v127
    %129 = vdwg.mxu0
    %v130 = vmax.f32 %v108, 0.0
    %v131 = vmax.f32 %v128, 0.0
    %v132 = vld [vmem:[%s3] sm:$0x3]
    %v134 = vperm.slane %v132, 0
    %v135 = vperm.slane %v132, 1
    %v138 = vmul.f32 %v130, %v134
    %v139 = vmul.f32 %v131, %v135
    %v140 = vadd.f32 %v138, %v139
    %141 = vadd.xlane.f32.xlu0 %v140
    %v142 = vpop.xlane.xlu0 %141
    %s143 = sld [smem:[#allocation2]]
    %v144 = vstv %s143
    %v145 = vadd.f32 %v142, %v144
    %vm146 = vcmask 7168
    %147 = vst.msk [vmem:[%s5] sm:$0xff] %vm146, %v145
    // Predicated region
    $region30: #{tpu_custom_call.1} parent=1 // pred_check
      _
    $region31: #{tpu_custom_call.1} parent=1 // pred_check_branch
      %149 = sbr.rel (0) target = $region33
    $region32: #{tpu_custom_call.1} parent=1 // pred_region
      _
    $region33: #{tpu_custom_call.1} parent=1 // pred_fallthru
      _
    // Predicated region
    $region34: #{tpu_custom_call.1} parent=1 // pred_check
      _
    $region35: #{tpu_custom_call.1} parent=1 // pred_check_branch
      %151 = sbr.rel (0) target = $region37
    $region36: #{tpu_custom_call.1} parent=1 // pred_region
      _
    $region37: #{tpu_custom_call.1} parent=1 // pred_fallthru
      _
    %152 = vsyncpa [#allocation4], 1
    %153 = vsyncpa [#allocation6], 1

</llo_original>
